<compile_context>
chip_gen: v6e
topology: v6e:2x2x1
jax: 0.10.0
libtpu: 0.0.40
codegen_flags: <defaults>
</compile_context>

<pallas_src>
import functools

import jax
import jax.numpy as jnp
from jax.experimental import pallas as pl
from jax.experimental.pallas import tpu as pltpu

GAMMA = 2.0     # Focal_Loss.__init__ default (specialized: pow -> square)
WEIGHT = 0.25   # Focal_Loss.__init__ default
EPS = 1e-7


def _pick_tile(n_rows, n_classes, itemsize, *, target_block_bytes=2 << 20, align=16):
    """Rows per batch tile: ~target_block_bytes per input block, a multiple of
    `align` sublanes, and never (much) larger than the batch itself."""
    rows = target_block_bytes // max(1, n_classes * itemsize)
    rows = max(align, (rows // align) * align)
    n_up = int(pl.cdiv(n_rows, align)) * align
    return int(min(rows, n_up))


def _write_partial(out_ref, partial):
    # Lane-dense, (8,128)-aligned, unmasked store of the per-tile partial sum;
    # the host wrapper reads element [0, 0] of each tile.
    out_ref[...] = jnp.full(out_ref.shape, partial, dtype=out_ref.dtype)


def _focal_idx_kernel(preds_ref, idx_ref, out_ref, *, n_rows):
    """One grid step = one batch tile. Labels arrive as int32 class indices;
    the one-hot mask is rebuilt in-register (no dense labels HBM stream)."""
    i = pl.program_id(0)
    tile, n_classes = preds_ref.shape

    p = preds_ref[...].astype(jnp.float32)            # (tile, C)
    idx = idx_ref[...]                                # (tile, 1) int32

    row = jax.lax.broadcasted_iota(jnp.int32, (tile, n_classes), 0)
    col = jax.lax.broadcasted_iota(jnp.int32, (tile, n_classes), 1)
    valid_row = (i * tile + row) < n_rows             # ragged last tile
    hit = (col == idx) & valid_row                    # in-register one-hot

    one_minus_p = 1.0 - p
    core = one_minus_p * one_minus_p * jnp.log(p + EPS)   # sign/weight folded out
    # SELECT (not multiply): out-of-bounds preds are garbage and may yield
    # NaN/Inf from log(); jnp.where discards those lanes safely.
    partial = jnp.sum(jnp.where(hit, core, 0.0))

    _write_partial(out_ref, partial)


def _focal_dense_kernel(preds_ref, labels_ref, out_ref, *, n_rows):
    """Fallback for arbitrary (soft) labels: dense (tile, C) labels block."""
    i = pl.program_id(0)
    tile, n_classes = preds_ref.shape

    p = preds_ref[...].astype(jnp.float32)
    t = labels_ref[...].astype(jnp.float32)

    row = jax.lax.broadcasted_iota(jnp.int32, (tile, n_classes), 0)
    valid_row = (i * tile + row) < n_rows

    one_minus_p = 1.0 - p
    core = one_minus_p * one_minus_p * jnp.log(p + EPS) * t
    partial = jnp.sum(jnp.where(valid_row, core, 0.0))

    _write_partial(out_ref, partial)


def _run(kernel, inputs, in_specs, n_rows, num_tiles):
    partials = pl.pallas_call(
        kernel,
        out_shape=jax.ShapeDtypeStruct((num_tiles, 8, 128), jnp.float32),
        grid_spec=pltpu.PrefetchScalarGridSpec(
            num_scalar_prefetch=0,
            grid=(num_tiles,),
            in_specs=in_specs,
            out_specs=pl.BlockSpec((1, 8, 128), lambda i: (i, 0, 0)),
        ),
        compiler_params=pltpu.CompilerParams(
            # No carried state: every tile is independent -> megacore-friendly.
            dimension_semantics=("parallel",)),
    )(*inputs)
    # Tiny epilogue in plain JAX: one partial per tile, then fold the (-weight)
    # sign flip and the 1/N mean into a single scalar multiply.
    return jnp.sum(partials[:, 0, 0]) * (-WEIGHT / float(n_rows))


def focal_loss_onehot(preds, target_idx):
    """Focal loss for one-hot labels given as int32 class indices.
    Reads N*C preds + N indices from HBM (no dense labels stream)."""
    n, c = preds.shape
    tile = _pick_tile(n, c, preds.dtype.itemsize)
    num_tiles = int(pl.cdiv(n, tile))
    idx = target_idx.astype(jnp.int32).reshape(n, 1)

    kernel = functools.partial(_focal_idx_kernel, n_rows=n)
    in_specs = [
        pl.BlockSpec((tile, c), lambda i: (i, 0)),
        pl.BlockSpec((tile, 1), lambda i: (i, 0)),
    ]
    # TODO(synk): a gather variant (read only p[i, target[i]] via manual DMA)
    # would cut HBM traffic by ~C, but needs data-dependent gather machinery.
    return _run(kernel, (preds, idx), in_specs, n, num_tiles)


def focal_loss(preds, labels):
    """Focal loss with dense (possibly soft) labels — exact module semantics."""
    n, c = preds.shape
    tile = _pick_tile(n, c, preds.dtype.itemsize)
    num_tiles = int(pl.cdiv(n, tile))

    kernel = functools.partial(_focal_dense_kernel, n_rows=n)
    in_specs = [
        pl.BlockSpec((tile, c), lambda i: (i, 0)),
        pl.BlockSpec((tile, c), lambda i: (i, 0)),
    ]
    # TODO(synk): for C so huge that even 16 rows x C overflows the block
    # budget, add a second ("arbitrary") grid axis over the class dimension.
    return _run(kernel, (preds, labels), in_specs, n, num_tiles)


def focal_loss_ref(preds, labels):
    """Pure-JAX reference matching the PyTorch forward exactly."""
    ce = -jnp.log(preds + EPS) * labels
    floss = jnp.power(1.0 - preds, GAMMA) * ce * WEIGHT
    return jnp.mean(jnp.sum(floss, axis=1))


if __name__ == "__main__":
    key = jax.random.PRNGKey(0)

    # Small shapes consistent with the module: (batch=16, classes=128), plus a
    # non-tile-aligned batch (20) to exercise the ragged-last-tile masking.
    for n, c in [(16, 128), (20, 128)]:
        k_logits, k_labels, key = jax.random.split(key, 3)
        logits = jax.random.normal(k_logits, (n, c), dtype=jnp.float32)
        preds = jax.nn.softmax(logits, axis=-1)                    # "softmax输出结果"
        target_idx = jax.random.randint(k_labels, (n,), 0, c)
        labels = jax.nn.one_hot(target_idx, c, dtype=jnp.float32)  # labels.to(torch.float)

        ref = focal_loss_ref(preds, labels)

        loss_dense = jax.block_until_ready(focal_loss(preds, labels))
        loss_idx = jax.block_until_ready(focal_loss_onehot(preds, target_idx))

        assert jnp.allclose(loss_dense, ref, rtol=1e-5, atol=1e-6), (n, loss_dense, ref)
        assert jnp.allclose(loss_idx, ref, rtol=1e-5, atol=1e-6), (n, loss_idx, ref)

    print("KERNEL_OK")
</pallas_src>

<mosaic_0001>
module attributes {stable_mosaic.version = 11 : i64} {
  func.func @_focal_dense_kernel(%arg0: i32, %arg1: memref<16x128xf32, #tpu.memory_space<vmem>>, %arg2: memref<16x128xf32, #tpu.memory_space<vmem>>, %arg3: memref<1x8x128xf32, #tpu.memory_space<vmem>>) attributes {dimension_semantics = [#tpu.dimension_semantics<parallel>], iteration_bounds = array<i64: 1>, scalar_prefetch = 0 : i64, scratch_operands = 0 : i64, tpu.core_type = #tpu.core_type<tc>, window_params = [{transform_indices = @transform_0, window_bounds = array<i64: 16, 128>}, {transform_indices = @transform_1, window_bounds = array<i64: 16, 128>}, {transform_indices = @transform_2, window_bounds = array<i64: 1, 8, 128>}]} {
    %c0 = arith.constant 0 : index
    %c0_0 = arith.constant 0 : index
    %0 = vector.load %arg1[%c0, %c0_0] : memref<16x128xf32, #tpu.memory_space<vmem>>, vector<16x128xf32>
    %c0_1 = arith.constant 0 : index
    %c0_2 = arith.constant 0 : index
    %1 = vector.load %arg2[%c0_1, %c0_2] : memref<16x128xf32, #tpu.memory_space<vmem>>, vector<16x128xf32>
    %2 = tpu.iota {dimensions = array<i32: 0>} : vector<16x128xi32>
    %c16_i32 = arith.constant 16 : i32
    %3 = arith.muli %arg0, %c16_i32 : i32
    %4 = vector.broadcast %3 : i32 to vector<16x128xi32>
    %5 = arith.addi %4, %2 : vector<16x128xi32>
    %c16_i32_3 = arith.constant 16 : i32
    %6 = vector.broadcast %c16_i32_3 : i32 to vector<16x128xi32>
    %7 = arith.cmpi slt, %5, %6 : vector<16x128xi32>
    %cst = arith.constant 1.000000e+00 : f32
    %8 = vector.broadcast %cst : f32 to vector<16x128xf32>
    %9 = arith.subf %8, %0 : vector<16x128xf32>
    %10 = arith.mulf %9, %9 : vector<16x128xf32>
    %cst_4 = arith.constant 1.000000e-07 : f32
    %11 = vector.broadcast %cst_4 : f32 to vector<16x128xf32>
    %12 = arith.addf %0, %11 : vector<16x128xf32>
    %13 = math.log %12 : vector<16x128xf32>
    %14 = arith.mulf %10, %13 : vector<16x128xf32>
    %15 = arith.mulf %14, %1 : vector<16x128xf32>
    %cst_5 = arith.constant 0.000000e+00 : f32
    %16 = vector.broadcast %cst_5 : f32 to vector<16x128xf32>
    %17 = arith.select %7, %15, %16 : vector<16x128xi1>, vector<16x128xf32>
    %18 = vector.shape_cast %17 : vector<16x128xf32> to vector<1x16x128xf32>
    %cst_6 = arith.constant dense<0.000000e+00> : vector<1xf32>
    %19 = vector.multi_reduction <add>, %18, %cst_6 [1, 2] : vector<1x16x128xf32> to vector<1xf32>
    %20 = vector.shape_cast %19 : vector<1xf32> to vector<1x1x1xf32>
    %21 = vector.extract %20[0, 0, 0] : f32 from vector<1x1x1xf32>
    %22 = vector.broadcast %21 : f32 to vector<1x8x128xf32>
    %c0_7 = arith.constant 0 : index
    %c0_8 = arith.constant 0 : index
    %c0_9 = arith.constant 0 : index
    %23 = vector.load %arg3[%c0_7, %c0_8, %c0_9] : memref<1x8x128xf32, #tpu.memory_space<vmem>>, vector<1x8x128xf32>
    tpu.vector_store %arg3[%c0_7, %c0_8, %c0_9], %22 {strides = array<i32>} : memref<1x8x128xf32, #tpu.memory_space<vmem>>, vector<1x8x128xf32>,
    return
  }
  func.func @transform_0(%arg0: i32) -> (i32, i32) {
    %c0_i32 = arith.constant 0 : i32
    %c0_i32_0 = arith.constant 0 : i32
    return %arg0, %c0_i32 : i32, i32
  }
  func.func @transform_1(%arg0: i32) -> (i32, i32) {
    %c0_i32 = arith.constant 0 : i32
    %c0_i32_0 = arith.constant 0 : i32
    return %arg0, %c0_i32 : i32, i32
  }
  func.func @transform_2(%arg0: i32) -> (i32, i32, i32) {
    %c0_i32 = arith.constant 0 : i32
    %c0_i32_0 = arith.constant 0 : i32
    %c0_i32_1 = arith.constant 0 : i32
    return %arg0, %c0_i32, %c0_i32_0 : i32, i32, i32
  }
}

</mosaic_0001>

<llo_original>
// kernel: tpu_custom_call.1
$region0: #{tpu_custom_call.1}
  #allocation0 [shape = 'u32[]', space=smem, size = 0x4, offset = 0x4, fixed_abs, tag = 'smem constant byte address 0x4 - core index']
  #allocation1 [shape = 'u32[144,128]{1,0:T(1,128)}', space=vmem, size = 0x12000, scoped, tag = 'internal scratch']
  %s0 = inlined_call_operand.hbm [shape: f32[16,128], index: 0, kind: input, shape index: {}]
  %s1 = inlined_call_operand.hbm [shape: f32[16,128], index: 1, kind: input, shape index: {}]
  %s2 = inlined_call_operand.hbm [shape: f32[1,8,128], index: 2, kind: output, shape index: {}]
  %s3 = sld [smem:[#allocation0]]
  $region26: #{tpu_custom_call.1} parent=0
    _
  %s5 = ssub.s32 1, %s3
  %s6 = scalar_select 0, %s5, %s3
  $region1: #{tpu_custom_call.1} parent=0
    #allocation2 [shape = 'u8[8192]{0}', space=vmem, size = 0x2000, scoped, tag = 'input window, operand 0, single buffered']
    #allocation3 [shape = 's32[1]{0}', space=sflag, size = 0x4, scoped, tag = 'scoped memory for tpu_custom_call.1']
    #allocation4 [shape = 's32[1]{0}', space=sflag, size = 0x4, scoped, tag = 'scoped memory for tpu_custom_call.1']
    #allocation5 [shape = 'u8[8192]{0}', space=vmem, size = 0x2000, scoped, tag = 'input window, operand 1, single buffered']
    #allocation6 [shape = 's32[1]{0}', space=sflag, size = 0x4, scoped, tag = 'scoped memory for tpu_custom_call.1']
    #allocation7 [shape = 'u8[4096]{0}', space=vmem, size = 0x1000, scoped, tag = 'output window, operand 0, single buffered']
    %7 = vsyncpa [#allocation3], 0
    %8 = vsyncpa [#allocation6], 0
    %9 = vsyncpa [#allocation4], 0
    // Predicated region
    $region2: #{tpu_custom_call.1} parent=1 // pred_check
      _
    $region3: #{tpu_custom_call.1} parent=1 // pred_check_branch
      %11 = sbr.rel (0) target = $region5
    $region4: #{tpu_custom_call.1} parent=1 // pred_region
      %s13 = ssub.s32 256, 256
      %14 = vsyncadd [#allocation3], %s13
      %s15 = sshll.u32 [#allocation2], 4
      %s16 = int_to_ptr.vmem [resolvable:$true] %s15
      %21 = dma.hbm_to_vmem [thread:$0]  %s0, 256, %s16, [#allocation3], 128, 128, 8
    $region5: #{tpu_custom_call.1} parent=1 // pred_fallthru
      _
    // Predicated region
    $region6: #{tpu_custom_call.1} parent=1 // pred_check
      _
    $region7: #{tpu_custom_call.1} parent=1 // pred_check_branch
      %23 = sbr.rel (0) target = $region9
    $region8: #{tpu_custom_call.1} parent=1 // pred_region
      %s25 = ssub.s32 256, 256
      %26 = vsyncadd [#allocation6], %s25
      %s27 = sshll.u32 [#allocation5], 4
      %s28 = int_to_ptr.vmem [resolvable:$true] %s27
      %33 = dma.hbm_to_vmem [thread:$0]  %s1, 256, %s28, [#allocation6], 128, 128, 8
    $region9: #{tpu_custom_call.1} parent=1 // pred_fallthru
      _
    // Predicated region
    $region10: #{tpu_custom_call.1} parent=1 // pred_check
      _
    $region11: #{tpu_custom_call.1} parent=1 // pred_check_branch
      %35 = sbr.rel (0) target = $region13
    $region12: #{tpu_custom_call.1} parent=1 // pred_region
      %36 = dma.done [#allocation3], 256
    $region13: #{tpu_custom_call.1} parent=1 // pred_fallthru
      _
    // Predicated region
    $region14: #{tpu_custom_call.1} parent=1 // pred_check
      _
    $region15: #{tpu_custom_call.1} parent=1 // pred_check_branch
      %38 = sbr.rel (0) target = $region17
    $region16: #{tpu_custom_call.1} parent=1 // pred_region
      %39 = dma.done [#allocation6], 256
    $region17: #{tpu_custom_call.1} parent=1 // pred_fallthru
      _
    %v40 = vld [vmem:[#allocation2] sm:$0xff]
    %v41 = vld [vmem:[#allocation2 + $0x8] sm:$0xff]
    %v42 = vld [vmem:[#allocation5] sm:$0xff]
    %v43 = vld [vmem:[#allocation5 + $0x8] sm:$0xff]
    %v44 = vlaneseq
    %v45 = vshrl.u32 %v44, 7
    %v46 = vadd.s32 %v45, 8
    %s47 = smul.u32 0, 16
    %v48 = vstv %s47
    %v49 = vadd.s32 %v48, %v45
    %v50 = vadd.s32 %v48, %v46
    %vm51 = vcmp.lt.s32.totalorder %v49, 16
    %vm52 = vcmp.lt.s32.totalorder %v50, 16
    %v53 = vsub.f32 1.0, %v40
    %v54 = vsub.f32 1.0, %v41
    %v55 = vmul.f32 %v53, %v53
    %v56 = vmul.f32 %v54, %v54
    %v57 = vadd.f32 %v40, 1e-07
    %v58 = vadd.f32 %v41, 1e-07
    %v59 = vlog2.pop %v57
    %v60 = vmul.f32 %v59, 0.6931472
    %v61 = vlog2.pop %v58
    %v62 = vmul.f32 %v61, 0.6931472
    %v63 = vmul.f32 %v55, %v60
    %v64 = vmul.f32 %v56, %v62
    %v65 = vmul.f32 %v63, %v42
    %v66 = vmul.f32 %v64, %v43
    %v67 = vsel %vm51, %v65, 0.0
    %v68 = vsel %vm52, %v66, 0.0
    %v69 = vadd.f32 %v67, %v68
    %70 = vadd.xlane.f32.xlu0 %v69
    %v71 = vpop.xlane.xlu0 %70
    %v72 = vrot.slane %v71, 4
    %v73 = vadd.f32 %v71, %v72
    %v74 = vrot.slane %v73, 2
    %v75 = vadd.f32 %v73, %v74
    %v76 = vrot.slane %v75, 1
    %v77 = vadd.f32 %v75, %v76
    %s78 = vtos %v77
    %v79 = vstv %s78
    %80 = vst [vmem:[#allocation7] sm:$0xff] %v79
    // Predicated region
    $region18: #{tpu_custom_call.1} parent=1 // pred_check
      _
    $region19: #{tpu_custom_call.1} parent=1 // pred_check_branch
      %82 = sbr.rel (0) target = $region21
    $region20: #{tpu_custom_call.1} parent=1 // pred_region
      %s84 = ssub.s32 128, 128
      %85 = vsyncadd [#allocation4], %s84
      %s87 = sshll.u32 [#allocation7], 4
      %s88 = int_to_ptr.vmem [resolvable:$true] %s87
      %90 = dma.vmem_to_hbm [thread:$0]  %s88, 128, %s2, [#allocation4]
    $region21: #{tpu_custom_call.1} parent=1 // pred_fallthru
      _
    // Predicated region
    $region22: #{tpu_custom_call.1} parent=1 // pred_check
      _
    $region23: #{tpu_custom_call.1} parent=1 // pred_check_branch
      %92 = sbr.rel (0) target = $region25
    $region24: #{tpu_custom_call.1} parent=1 // pred_region
      %93 = dma.done [#allocation4], 128
    $region25: #{tpu_custom_call.1} parent=1 // pred_fallthru
      _
    %94 = vsyncpa [#allocation3], 1
    %95 = vsyncpa [#allocation6], 1
    %96 = vsyncpa [#allocation4], 1

</llo_original>
